<compile_context>
chip_gen: v7x
topology: tpu7x:2x2x1
jax: 0.10.0
libtpu: 0.0.40
codegen_flags: <defaults>
</compile_context>

<pallas_src>
import functools

import jax
import jax.numpy as jnp
from jax.experimental import pallas as pl
from jax.experimental.pallas import tpu as pltpu

_NEG_BIG = -1e30  # finite "minus infinity": keeps exp(m_old - m_new) NaN-free.


def _round_up(x, m):
    return ((x + m - 1) // m) * m


def _vmem_limit_bytes():
    """~90% of this generation's VMEM (64 MiB on v7x, 128 MiB on v5e/v6e)."""
    try:
        cap = pltpu.get_tpu_info().vmem_capacity_bytes
    except Exception:  # interpret mode / older jax: assume the small (v7x) size.
        cap = 64 * 1024 * 1024
    return int(cap * 0.90)


def _pick_tiles(two_b, d_pad, n, mm_itemsize, budget):
    """Pick (TM, TN).

    TM is the full (8-rounded) M when small, otherwise a multiple of 128 chosen
    so the row grid has >= 2 steps (v7x has 2 TensorCores on the parallel axis).
    TN is the column streaming block, chosen so the per-step working set fits
    the VMEM budget.
    """
    m_full = _round_up(two_b, 8)

    def fits(tm, tn):
        need = (2 * d_pad * tn * mm_itemsize      # q_all^T block, double-buffered
                + 2 * tm * d_pad * mm_itemsize    # q row tile, double-buffered
                + 10 * tm * tn * 4                # live [TM,TN] f32 temps (conservative)
                + 16 * tn * 4 + 16 * tm * 4)      # small row/col operands + scratch
        return need <= budget

    if m_full <= 256:
        tm_cands = [m_full]                                      # single row tile
    else:
        tm_cands = [t for t in (512, 256, 128) if t < m_full]    # >= 2 row tiles

    n_pad128 = _round_up(n, 128)
    tn_cands = list(dict.fromkeys(min(n_pad128, c) for c in (1024, 512, 256, 128)))

    for tm in tm_cands:
        for tn in tn_cands:
            if fits(tm, tn):
                return tm, tn
    # TODO(synk): if even the smallest tiles exceed the budget (very large D),
    # additionally tile the contraction (D) axis instead of relying on vmem_limit.
    return tm_cands[-1], tn_cands[-1]


def _supcon_pda_kernel(inv_t, n_valid,
                       q_ref, qt_ref, rowt_ref, msum_ref,
                       colt_ref, invcc_ref, invccm1_ref,
                       out_ref, m_scr, l_scr, sml_scr):
    tm = q_ref.shape[0]
    tn = qt_ref.shape[1]
    j = pl.program_id(1)
    row0 = pl.program_id(0) * tm
    col0 = j * tn

    @pl.when(j == 0)
    def _():
        m_scr[...] = jnp.full_like(m_scr, _NEG_BIG)
        l_scr[...] = jnp.zeros_like(l_scr)
        sml_scr[...] = jnp.zeros_like(sml_scr)

    # logits block = (q rows @ q_all^T block) / T   (f32 MXU accumulation).
    logits = jnp.dot(q_ref[...], qt_ref[...],
                     preferred_element_type=jnp.float32) * inv_t        # [TM, TN]

    # Masks rebuilt in-register from [TM,1] / [1,TN] operands; kept boolean.
    col_idx = jax.lax.broadcasted_iota(jnp.int32, (1, tn), 1) + col0
    row_idx = jax.lax.broadcasted_iota(jnp.int32, (tm, 1), 0) + row0
    lmask_b = jnp.logical_and(col_idx < n_valid, col_idx != row_idx)    # valid & not-self
    pos_b = jnp.logical_and(rowt_ref[...] == colt_ref[...], lmask_b)    # positive pairs

    # Online masked max (the shift cancels exactly in log_prob; padded/self
    # columns can never dominate because they are excluded here).
    blk_max = jnp.max(jnp.where(lmask_b, logits, _NEG_BIG), axis=1, keepdims=True)
    m_new = jnp.maximum(m_scr[...], blk_max)
    alpha = jnp.exp(m_scr[...] - m_new)

    # per-instance weight is cc[j] or cc[j]-1: select precomputed reciprocals.
    inv_w = jnp.where(pos_b, invccm1_ref[...], invcc_ref[...])
    e = jnp.where(lmask_b, jnp.exp(logits - m_new) * inv_w, 0.0)

    l_scr[...] = alpha * l_scr[...] + jnp.sum(e, axis=1, keepdims=True)
    sml_scr[...] = sml_scr[...] + jnp.sum(jnp.where(pos_b, logits, 0.0),
                                          axis=1, keepdims=True)
    m_scr[...] = m_new

    @pl.when(j == pl.num_programs(1) - 1)
    def _():
        # sum_j mask*log_prob = sum_j mask*logits - msum*(m + log l)
        msum = msum_ref[...]                                    # [TM, 1]
        log_denom = m_scr[...] + jnp.log(l_scr[...])
        safe = jnp.where(msum > 0.0, msum, 1.0)
        mlpp = (sml_scr[...] - msum * log_denom) / safe
        out_ref[...] = jnp.where(msum > 0.0, -mlpp, 0.0)        # 0 on padded rows


def supcon_pda_loss(q, labels, prototypes, temperature=0.07, num_classes=5,
                    matmul_dtype=jnp.bfloat16):
    """Pallas implementation of SupConPDALoss.forward.

    q:          [2*B, D] float features (two views per sample, stacked)
    labels:     [B] int class labels in [0, num_classes)
    prototypes: [num_classes, D] float class prototypes
    matmul_dtype: MXU operand dtype (bf16 default; f32 for strict-tolerance paths)
    returns scalar float32 loss
    """
    q = jnp.asarray(q, jnp.float32)
    prototypes = jnp.asarray(prototypes, jnp.float32)
    labels = labels.astype(jnp.int32)

    batch_size = labels.shape[0]
    two_b = 2 * batch_size
    d = q.shape[1]
    n = two_b + num_classes

    d_pad = _round_up(d, 128)
    mm_itemsize = jnp.dtype(matmul_dtype).itemsize
    vmem_limit = _vmem_limit_bytes()
    tm, tn = _pick_tiles(two_b, d_pad, n, mm_itemsize, int(vmem_limit * 0.75))
    m_pad = _round_up(two_b, tm)
    n_pad = _round_up(n, tn)
    grid = (m_pad // tm, n_pad // tn)

    # targets = [labels ; labels ; 0..C-1]; per-class counts over all N columns.
    targets = jnp.concatenate(
        [labels, labels, jnp.arange(num_classes, dtype=jnp.int32)])           # [N]
    cls_count = jnp.sum(
        jax.nn.one_hot(targets, num_classes, dtype=jnp.float32), axis=0)       # [C]
    col_cc = cls_count[targets]                                                # [N]

    # Lane-dense padded column operands (padded cols: target=-1, recips=1.0;
    # they are excluded from every sum by the validity mask).
    col_targets = jnp.full((1, n_pad), -1, jnp.int32).at[0, :n].set(targets)
    inv_cc = jnp.ones((1, n_pad), jnp.float32).at[0, :n].set(1.0 / col_cc)
    inv_ccm1 = jnp.ones((1, n_pad), jnp.float32).at[0, :n].set(
        1.0 / jnp.maximum(col_cc - 1.0, 1.0))

    # Row operands: class target and analytic positive count (cls_count - 1).
    row_targets = (jnp.full((m_pad, 1), -1, jnp.int32)
                   .at[:two_b, 0].set(targets[:two_b]))
    row_msum = (jnp.zeros((m_pad, 1), jnp.float32)
                .at[:two_b, 0].set(col_cc[:two_b] - 1.0))

    # Pre-transposed RHS [D_pad, N_pad] and row operand [M_pad, D_pad].
    q_all_t = jnp.zeros((d_pad, n_pad), jnp.float32)
    q_all_t = q_all_t.at[:d, :two_b].set(q.T).at[:d, two_b:n].set(prototypes.T)
    q_rows = jnp.zeros((m_pad, d_pad), jnp.float32).at[:two_b, :d].set(q)
    q_all_t = q_all_t.astype(matmul_dtype)
    q_rows = q_rows.astype(matmul_dtype)

    kernel = functools.partial(_supcon_pda_kernel, float(1.0 / temperature), n)

    per_row = pl.pallas_call(
        kernel,
        out_shape=jax.ShapeDtypeStruct((m_pad, 1), jnp.float32),
        grid_spec=pltpu.PrefetchScalarGridSpec(
            num_scalar_prefetch=0,
            grid=grid,
            in_specs=[
                pl.BlockSpec((tm, d_pad), lambda i, j: (i, 0)),   # q row tile
                pl.BlockSpec((d_pad, tn), lambda i, j: (0, j)),   # q_all^T column block
                pl.BlockSpec((tm, 1), lambda i, j: (i, 0)),       # row targets
                pl.BlockSpec((tm, 1), lambda i, j: (i, 0)),       # row positive counts
                pl.BlockSpec((1, tn), lambda i, j: (0, j)),       # col targets
                pl.BlockSpec((1, tn), lambda i, j: (0, j)),       # 1 / cls_count
                pl.BlockSpec((1, tn), lambda i, j: (0, j)),       # 1 / (cls_count - 1)
            ],
            out_specs=pl.BlockSpec((tm, 1), lambda i, j: (i, 0)),
            scratch_shapes=[pltpu.VMEM((tm, 1), jnp.float32),     # running max
                            pltpu.VMEM((tm, 1), jnp.float32),     # running exp-sum
                            pltpu.VMEM((tm, 1), jnp.float32)],    # sum(mask * logits)
        ),
        compiler_params=pltpu.CompilerParams(
            dimension_semantics=("parallel", "arbitrary"),
            vmem_limit_bytes=vmem_limit,
        ),
    )(q_rows, q_all_t, row_targets, row_msum, col_targets, inv_cc, inv_ccm1)

    # per_row holds -mean_log_prob_pos for real rows and 0 for padded rows.
    return jnp.sum(per_row) / float(two_b)


def _reference_loss(q, labels, prototypes, temperature=0.07, num_classes=5):
    """Pure-JAX port of the PyTorch forward, used for verification."""
    labels = labels.astype(jnp.int32)
    batch_size = labels.shape[0]
    two_b = 2 * batch_size
    targets = jnp.concatenate(
        [labels, labels, jnp.arange(num_classes, dtype=jnp.int32)])
    cls_count = jnp.sum(jax.nn.one_hot(targets, num_classes,
                                       dtype=jnp.float32), axis=0)
    mask = (targets[:two_b, None] == targets[None, :]).astype(jnp.float32)
    logits_mask = jnp.ones_like(mask)
    idx = jnp.arange(two_b)
    logits_mask = logits_mask.at[idx, idx].set(0.0)
    mask = mask * logits_mask
    q_all = jnp.concatenate([q, prototypes], axis=0).astype(jnp.float32)
    logits = q_all[:two_b] @ q_all.T / temperature
    logits = logits - jnp.max(logits, axis=1, keepdims=True)
    exp_logits = jnp.exp(logits) * logits_mask
    per_ins_weight = cls_count[targets][None, :] - mask
    exp_logits_sum = jnp.sum(exp_logits / per_ins_weight, axis=1, keepdims=True)
    log_prob = logits - jnp.log(exp_logits_sum)
    mean_log_prob_pos = jnp.sum(mask * log_prob, axis=1) / jnp.sum(mask, axis=1)
    return jnp.mean(-mean_log_prob_pos)


if __name__ == "__main__":
    key = jax.random.PRNGKey(0)
    k_q, k_lab, k_proto = jax.random.split(key, 3)

    batch_size = 4
    num_classes = 5
    feat_dim = 32
    temperature = 0.07

    # SupCon operates on L2-normalized embeddings; normalizing also keeps
    # exp(logits/T) well-conditioned.
    q = jax.random.normal(k_q, (2 * batch_size, feat_dim), dtype=jnp.float32)
    q = q / jnp.linalg.norm(q, axis=1, keepdims=True)
    labels = jax.random.randint(k_lab, (batch_size,), 0, num_classes,
                                dtype=jnp.int32)
    prototypes = jax.random.normal(k_proto, (num_classes, feat_dim),
                                   dtype=jnp.float32)
    prototypes = prototypes / jnp.linalg.norm(prototypes, axis=1, keepdims=True)

    ref = _reference_loss(q, labels, prototypes,
                          temperature=temperature, num_classes=num_classes)
    ref = jax.block_until_ready(ref)

    # Strict check: f32 MXU operands match the f32 reference to 1e-4.
    loss_f32 = supcon_pda_loss(q, labels, prototypes, temperature=temperature,
                               num_classes=num_classes, matmul_dtype=jnp.float32)
    loss_f32 = jax.block_until_ready(loss_f32)
    assert jnp.isfinite(loss_f32), loss_f32
    assert jnp.allclose(loss_f32, ref, atol=1e-4, rtol=1e-4), (loss_f32, ref)

    # Performance default: bf16 MXU operands with f32 accumulation.  1/T = 14.3
    # amplifies bf16 input rounding, so this path is checked at a looser tolerance.
    loss_bf16 = supcon_pda_loss(q, labels, prototypes, temperature=temperature,
                                num_classes=num_classes)
    loss_bf16 = jax.block_until_ready(loss_bf16)
    assert jnp.isfinite(loss_bf16), loss_bf16
    assert jnp.allclose(loss_bf16, ref, atol=5e-2, rtol=5e-2), (loss_bf16, ref)

    print("KERNEL_OK")
</pallas_src>

<mosaic_0001>
module attributes {stable_mosaic.version = 11 : i64} {
  func.func @_supcon_pda_kernel(%arg0: i32, %arg1: i32, %arg2: memref<8x128xf32, #tpu.memory_space<vmem>>, %arg3: memref<128x128xf32, #tpu.memory_space<vmem>>, %arg4: memref<8x1xi32, #tpu.memory_space<vmem>>, %arg5: memref<8x1xf32, #tpu.memory_space<vmem>>, %arg6: memref<1x128xi32, #tpu.memory_space<vmem>>, %arg7: memref<1x128xf32, #tpu.memory_space<vmem>>, %arg8: memref<1x128xf32, #tpu.memory_space<vmem>>, %arg9: memref<8x1xf32, #tpu.memory_space<vmem>>, %arg10: memref<8x1xf32, #tpu.memory_space<vmem>>, %arg11: memref<8x1xf32, #tpu.memory_space<vmem>>, %arg12: memref<8x1xf32, #tpu.memory_space<vmem>>) attributes {dimension_semantics = [#tpu.dimension_semantics<parallel>, #tpu.dimension_semantics<arbitrary>], iteration_bounds = array<i64: 1, 1>, scalar_prefetch = 0 : i64, scratch_operands = 3 : i64, tpu.core_type = #tpu.core_type<tc>, window_params = [{transform_indices = @transform_0, window_bounds = array<i64: 8, 128>}, {transform_indices = @transform_1, window_bounds = array<i64: 128, 128>}, {transform_indices = @transform_2, window_bounds = array<i64: 8, 1>}, {transform_indices = @transform_3, window_bounds = array<i64: 8, 1>}, {transform_indices = @transform_4, window_bounds = array<i64: 1, 128>}, {transform_indices = @transform_5, window_bounds = array<i64: 1, 128>}, {transform_indices = @transform_6, window_bounds = array<i64: 1, 128>}, {transform_indices = @transform_7, window_bounds = array<i64: 8, 1>}]} {
    %c8_i32 = arith.constant 8 : i32
    %0 = arith.muli %arg0, %c8_i32 : i32
    %c128_i32 = arith.constant 128 : i32
    %1 = arith.muli %arg1, %c128_i32 : i32
    %c0_i32 = arith.constant 0 : i32
    %2 = arith.cmpi eq, %arg1, %c0_i32 : i32
    %3 = arith.extui %2 : i1 to i32
    %c0_i32_0 = arith.constant 0 : i32
    %4 = arith.cmpi ne, %3, %c0_i32_0 : i32
    scf.if %4 {
      %cst_35 = arith.constant -1.000000e+30 : f32
      %68 = vector.broadcast %cst_35 : f32 to vector<8x1xf32>
      %c0_36 = arith.constant 0 : index
      %c0_37 = arith.constant 0 : index
      %69 = vector.load %arg10[%c0_36, %c0_37] : memref<8x1xf32, #tpu.memory_space<vmem>>, vector<8x1xf32>
      tpu.vector_store %arg10[%c0_36, %c0_37], %68 {strides = array<i32>} : memref<8x1xf32, #tpu.memory_space<vmem>>, vector<8x1xf32>,
      %cst_38 = arith.constant 0.000000e+00 : f32
      %70 = vector.broadcast %cst_38 : f32 to vector<8x1xf32>
      %c0_39 = arith.constant 0 : index
      %c0_40 = arith.constant 0 : index
      %71 = vector.load %arg11[%c0_39, %c0_40] : memref<8x1xf32, #tpu.memory_space<vmem>>, vector<8x1xf32>
      tpu.vector_store %arg11[%c0_39, %c0_40], %70 {strides = array<i32>} : memref<8x1xf32, #tpu.memory_space<vmem>>, vector<8x1xf32>,
      %cst_41 = arith.constant 0.000000e+00 : f32
      %72 = vector.broadcast %cst_41 : f32 to vector<8x1xf32>
      %c0_42 = arith.constant 0 : index
      %c0_43 = arith.constant 0 : index
      %73 = vector.load %arg12[%c0_42, %c0_43] : memref<8x1xf32, #tpu.memory_space<vmem>>, vector<8x1xf32>
      tpu.vector_store %arg12[%c0_42, %c0_43], %72 {strides = array<i32>} : memref<8x1xf32, #tpu.memory_space<vmem>>, vector<8x1xf32>,
    } else {
    }
    %c0 = arith.constant 0 : index
    %c0_1 = arith.constant 0 : index
    %5 = vector.load %arg2[%c0, %c0_1] : memref<8x128xf32, #tpu.memory_space<vmem>>, vector<8x128xf32>
    %c0_2 = arith.constant 0 : index
    %c0_3 = arith.constant 0 : index
    %6 = vector.load %arg3[%c0_2, %c0_3] : memref<128x128xf32, #tpu.memory_space<vmem>>, vector<128x128xf32>
    %cst = arith.constant dense<0.000000e+00> : vector<8x128xf32>
    %7 = tpu.matmul %5, %6, %cst {dimension_numbers = #tpu.dot_dimension_numbers<[1], [0], [0], [1], [0, 0, 1, 1], [], []>} : vector<8x128xf32>, vector<128x128xf32>, vector<8x128xf32> -> vector<8x128xf32>
    %cst_4 = arith.constant 14.2857141 : f32
    %8 = vector.broadcast %cst_4 : f32 to vector<8x128xf32>
    %9 = arith.mulf %7, %8 : vector<8x128xf32>
    %10 = tpu.iota {dimensions = array<i32: 1>} : vector<1x128xi32>
    %11 = vector.broadcast %1 : i32 to vector<1x128xi32>
    %12 = arith.addi %10, %11 : vector<1x128xi32>
    %13 = tpu.iota {dimensions = array<i32: 0>} : vector<8x1xi32>
    %14 = vector.broadcast %0 : i32 to vector<8x1xi32>
    %15 = arith.addi %13, %14 : vector<8x1xi32>
    %c13_i32 = arith.constant 13 : i32
    %16 = vector.broadcast %c13_i32 : i32 to vector<1x128xi32>
    %17 = arith.cmpi slt, %12, %16 : vector<1x128xi32>
    %18 = vector.broadcast %12 : vector<1x128xi32> to vector<8x128xi32>
    %19 = vector.broadcast %15 : vector<8x1xi32> to vector<8x128xi32>
    %20 = arith.cmpi ne, %18, %19 : vector<8x128xi32>
    %21 = vector.broadcast %17 : vector<1x128xi1> to vector<8x128xi1>
    %22 = arith.andi %21, %20 : vector<8x128xi1>
    %c0_5 = arith.constant 0 : index
    %c0_6 = arith.constant 0 : index
    %23 = vector.load %arg4[%c0_5, %c0_6] : memref<8x1xi32, #tpu.memory_space<vmem>>, vector<8x1xi32>
    %c0_7 = arith.constant 0 : index
    %c0_8 = arith.constant 0 : index
    %24 = vector.load %arg6[%c0_7, %c0_8] : memref<1x128xi32, #tpu.memory_space<vmem>>, vector<1x128xi32>
    %25 = vector.broadcast %23 : vector<8x1xi32> to vector<8x128xi32>
    %26 = vector.broadcast %24 : vector<1x128xi32> to vector<8x128xi32>
    %27 = arith.cmpi eq, %25, %26 : vector<8x128xi32>
    %28 = arith.andi %27, %22 : vector<8x128xi1>
    %cst_9 = arith.constant -1.000000e+30 : f32
    %29 = vector.broadcast %cst_9 : f32 to vector<8x128xf32>
    %30 = arith.select %22, %9, %29 : vector<8x128xi1>, vector<8x128xf32>
    %cst_10 = arith.constant dense<0xFF800000> : vector<8xf32>
    %31 = vector.multi_reduction <maximumf>, %30, %cst_10 [1] : vector<8x128xf32> to vector<8xf32>
    %32 = vector.shape_cast %31 : vector<8xf32> to vector<8x1xf32>
    %c0_11 = arith.constant 0 : index
    %c0_12 = arith.constant 0 : index
    %33 = vector.load %arg10[%c0_11, %c0_12] : memref<8x1xf32, #tpu.memory_space<vmem>>, vector<8x1xf32>
    %34 = arith.maximumf %33, %32 : vector<8x1xf32>
    %c0_13 = arith.constant 0 : index
    %c0_14 = arith.constant 0 : index
    %35 = vector.load %arg10[%c0_13, %c0_14] : memref<8x1xf32, #tpu.memory_space<vmem>>, vector<8x1xf32>
    %36 = arith.subf %35, %34 : vector<8x1xf32>
    %37 = math.exp %36 : vector<8x1xf32>
    %c0_15 = arith.constant 0 : index
    %c0_16 = arith.constant 0 : index
    %38 = vector.load %arg8[%c0_15, %c0_16] : memref<1x128xf32, #tpu.memory_space<vmem>>, vector<1x128xf32>
    %c0_17 = arith.constant 0 : index
    %c0_18 = arith.constant 0 : index
    %39 = vector.load %arg7[%c0_17, %c0_18] : memref<1x128xf32, #tpu.memory_space<vmem>>, vector<1x128xf32>
    %40 = vector.shape_cast %38 : vector<1x128xf32> to vector<1x128xf32>
    %41 = vector.broadcast %40 : vector<1x128xf32> to vector<8x128xf32>
    %42 = vector.shape_cast %39 : vector<1x128xf32> to vector<1x128xf32>
    %43 = vector.broadcast %42 : vector<1x128xf32> to vector<8x128xf32>
    %44 = arith.select %28, %41, %43 : vector<8x128xi1>, vector<8x128xf32>
    %45 = vector.broadcast %34 : vector<8x1xf32> to vector<8x128xf32>
    %46 = arith.subf %9, %45 : vector<8x128xf32>
    %47 = math.exp %46 : vector<8x128xf32>
    %48 = arith.mulf %47, %44 : vector<8x128xf32>
    %cst_19 = arith.constant 0.000000e+00 : f32
    %49 = vector.broadcast %cst_19 : f32 to vector<8x128xf32>
    %50 = arith.select %22, %48, %49 : vector<8x128xi1>, vector<8x128xf32>
    %c0_20 = arith.constant 0 : index
    %c0_21 = arith.constant 0 : index
    %51 = vector.load %arg11[%c0_20, %c0_21] : memref<8x1xf32, #tpu.memory_space<vmem>>, vector<8x1xf32>
    %52 = arith.mulf %37, %51 : vector<8x1xf32>
    %cst_22 = arith.constant dense<0.000000e+00> : vector<8xf32>
    %53 = vector.multi_reduction <add>, %50, %cst_22 [1] : vector<8x128xf32> to vector<8xf32>
    %54 = vector.shape_cast %53 : vector<8xf32> to vector<8x1xf32>
    %55 = arith.addf %52, %54 : vector<8x1xf32>
    %c0_23 = arith.constant 0 : index
    %c0_24 = arith.constant 0 : index
    %56 = vector.load %arg11[%c0_23, %c0_24] : memref<8x1xf32, #tpu.memory_space<vmem>>, vector<8x1xf32>
    tpu.vector_store %arg11[%c0_23, %c0_24], %55 {strides = array<i32>} : memref<8x1xf32, #tpu.memory_space<vmem>>, vector<8x1xf32>,
    %c0_25 = arith.constant 0 : index
    %c0_26 = arith.constant 0 : index
    %57 = vector.load %arg12[%c0_25, %c0_26] : memref<8x1xf32, #tpu.memory_space<vmem>>, vector<8x1xf32>
    %cst_27 = arith.constant 0.000000e+00 : f32
    %58 = vector.broadcast %cst_27 : f32 to vector<8x128xf32>
    %59 = arith.select %28, %9, %58 : vector<8x128xi1>, vector<8x128xf32>
    %cst_28 = arith.constant dense<0.000000e+00> : vector<8xf32>
    %60 = vector.multi_reduction <add>, %59, %cst_28 [1] : vector<8x128xf32> to vector<8xf32>
    %61 = vector.shape_cast %60 : vector<8xf32> to vector<8x1xf32>
    %62 = arith.addf %57, %61 : vector<8x1xf32>
    %c0_29 = arith.constant 0 : index
    %c0_30 = arith.constant 0 : index
    %63 = vector.load %arg12[%c0_29, %c0_30] : memref<8x1xf32, #tpu.memory_space<vmem>>, vector<8x1xf32>
    tpu.vector_store %arg12[%c0_29, %c0_30], %62 {strides = array<i32>} : memref<8x1xf32, #tpu.memory_space<vmem>>, vector<8x1xf32>,
    %c0_31 = arith.constant 0 : index
    %c0_32 = arith.constant 0 : index
    %64 = vector.load %arg10[%c0_31, %c0_32] : memref<8x1xf32, #tpu.memory_space<vmem>>, vector<8x1xf32>
    tpu.vector_store %arg10[%c0_31, %c0_32], %34 {strides = array<i32>} : memref<8x1xf32, #tpu.memory_space<vmem>>, vector<8x1xf32>,
    %c0_i32_33 = arith.constant 0 : i32
    %65 = arith.cmpi eq, %arg1, %c0_i32_33 : i32
    %66 = arith.extui %65 : i1 to i32
    %c0_i32_34 = arith.constant 0 : i32
    %67 = arith.cmpi ne, %66, %c0_i32_34 : i32
    scf.if %67 {
      %c0_35 = arith.constant 0 : index
      %c0_36 = arith.constant 0 : index
      %68 = vector.load %arg5[%c0_35, %c0_36] : memref<8x1xf32, #tpu.memory_space<vmem>>, vector<8x1xf32>
      %c0_37 = arith.constant 0 : index
      %c0_38 = arith.constant 0 : index
      %69 = vector.load %arg10[%c0_37, %c0_38] : memref<8x1xf32, #tpu.memory_space<vmem>>, vector<8x1xf32>
      %c0_39 = arith.constant 0 : index
      %c0_40 = arith.constant 0 : index
      %70 = vector.load %arg11[%c0_39, %c0_40] : memref<8x1xf32, #tpu.memory_space<vmem>>, vector<8x1xf32>
      %71 = math.log %70 : vector<8x1xf32>
      %72 = arith.addf %69, %71 : vector<8x1xf32>
      %cst_41 = arith.constant 0.000000e+00 : f32
      %73 = vector.broadcast %cst_41 : f32 to vector<8x1xf32>
      %74 = arith.cmpf ogt, %68, %73 : vector<8x1xf32>
      %cst_42 = arith.constant 1.000000e+00 : f32
      %75 = vector.broadcast %cst_42 : f32 to vector<8x1xf32>
      %76 = arith.select %74, %68, %75 : vector<8x1xi1>, vector<8x1xf32>
      %c0_43 = arith.constant 0 : index
      %c0_44 = arith.constant 0 : index
      %77 = vector.load %arg12[%c0_43, %c0_44] : memref<8x1xf32, #tpu.memory_space<vmem>>, vector<8x1xf32>
      %78 = arith.mulf %68, %72 : vector<8x1xf32>
      %79 = arith.subf %77, %78 : vector<8x1xf32>
      %80 = arith.divf %79, %76 : vector<8x1xf32>
      %cst_45 = arith.constant 0.000000e+00 : f32
      %81 = vector.broadcast %cst_45 : f32 to vector<8x1xf32>
      %82 = arith.cmpf ogt, %68, %81 : vector<8x1xf32>
      %cst_46 = arith.constant 0.000000e+00 : f32
      %83 = vector.broadcast %cst_46 : f32 to vector<8x1xf32>
      %84 = arith.subf %83, %80 : vector<8x1xf32>
      %cst_47 = arith.constant 0.000000e+00 : f32
      %85 = vector.broadcast %cst_47 : f32 to vector<8x1xf32>
      %86 = arith.select %82, %84, %85 : vector<8x1xi1>, vector<8x1xf32>
      %c0_48 = arith.constant 0 : index
      %c0_49 = arith.constant 0 : index
      %87 = vector.load %arg9[%c0_48, %c0_49] : memref<8x1xf32, #tpu.memory_space<vmem>>, vector<8x1xf32>
      tpu.vector_store %arg9[%c0_48, %c0_49], %86 {strides = array<i32>} : memref<8x1xf32, #tpu.memory_space<vmem>>, vector<8x1xf32>,
    } else {
    }
    return
  }
  func.func @transform_0(%arg0: i32, %arg1: i32) -> (i32, i32) {
    %c0_i32 = arith.constant 0 : i32
    %c0_i32_0 = arith.constant 0 : i32
    return %arg0, %c0_i32 : i32, i32
  }
  func.func @transform_1(%arg0: i32, %arg1: i32) -> (i32, i32) {
    %c0_i32 = arith.constant 0 : i32
    %c0_i32_0 = arith.constant 0 : i32
    return %c0_i32, %arg1 : i32, i32
  }
  func.func @transform_2(%arg0: i32, %arg1: i32) -> (i32, i32) {
    %c0_i32 = arith.constant 0 : i32
    %c0_i32_0 = arith.constant 0 : i32
    return %arg0, %c0_i32 : i32, i32
  }
  func.func @transform_3(%arg0: i32, %arg1: i32) -> (i32, i32) {
    %c0_i32 = arith.constant 0 : i32
    %c0_i32_0 = arith.constant 0 : i32
    return %arg0, %c0_i32 : i32, i32
  }
  func.func @transform_4(%arg0: i32, %arg1: i32) -> (i32, i32) {
    %c0_i32 = arith.constant 0 : i32
    %c0_i32_0 = arith.constant 0 : i32
    return %c0_i32, %arg1 : i32, i32
  }
  func.func @transform_5(%arg0: i32, %arg1: i32) -> (i32, i32) {
    %c0_i32 = arith.constant 0 : i32
    %c0_i32_0 = arith.constant 0 : i32
    return %c0_i32, %arg1 : i32, i32
  }
  func.func @transform_6(%arg0: i32, %arg1: i32) -> (i32, i32) {
    %c0_i32 = arith.constant 0 : i32
    %c0_i32_0 = arith.constant 0 : i32
    return %c0_i32, %arg1 : i32, i32
  }
  func.func @transform_7(%arg0: i32, %arg1: i32) -> (i32, i32) {
    %c0_i32 = arith.constant 0 : i32
    %c0_i32_0 = arith.constant 0 : i32
    return %arg0, %c0_i32 : i32, i32
  }
}

</mosaic_0001>

<llo_original>
// kernel: tpu_custom_call.1
$region0: #{tpu_custom_call.1}
  #allocation0 [shape = 'u32[]', space=smem, size = 0x4, offset = 0x4, fixed_abs, tag = 'smem constant byte address 0x4 - core index']
  #allocation1 [shape = 'u32[144,128]{1,0:T(1,128)}', space=vmem, size = 0x12000, scoped, tag = 'internal scratch']
  #allocation2 [shape = 'f32[8,1]{1,0:T(8,128)}', space=vmem, size = 0x1000, scoped, tag = 'scratch operand']
  #allocation3 [shape = 'f32[8,1]{1,0:T(8,128)}', space=vmem, size = 0x1000, scoped, tag = 'scratch operand']
  #allocation4 [shape = 'f32[8,1]{1,0:T(8,128)}', space=vmem, size = 0x1000, scoped, tag = 'scratch operand']
  %s0 = inlined_call_operand.vmem [shape: f32[8,128], index: 0, kind: input, shape index: {}]
  %s1 = inlined_call_operand.hbm [shape: f32[128,128], index: 1, kind: input, shape index: {}]
  %s2 = inlined_call_operand.vmem [shape: s32[8,1], index: 2, kind: input, shape index: {}]
  %s3 = inlined_call_operand.vmem [shape: f32[8,1], index: 3, kind: input, shape index: {}]
  %s4 = inlined_call_operand.vmem [shape: s32[1,128], index: 4, kind: input, shape index: {}]
  %s5 = inlined_call_operand.vmem [shape: f32[1,128], index: 5, kind: input, shape index: {}]
  %s6 = inlined_call_operand.vmem [shape: f32[1,128], index: 6, kind: input, shape index: {}]
  %s7 = inlined_call_operand.vmem [shape: f32[8,1], index: 7, kind: output, shape index: {}]
  %s8 = sld [smem:[#allocation0]]
  $region50: #{tpu_custom_call.1} parent=0
    _
  %s10 = ssub.s32 1, %s8
  %s11 = scalar_select 0, %s10, %s8
  $region1: #{tpu_custom_call.1} parent=0
    #allocation5 [shape = 'u8[65536]{0}', space=vmem, size = 0x10000, scoped, tag = 'input window, operand 1, single buffered']
    #allocation6 [shape = 's32[1]{0}', space=sflag, size = 0x4, scoped, tag = 'scoped memory for tpu_custom_call.1']
    %12 = vsyncpa [#allocation6], 0
    // Predicated region
    $region2: #{tpu_custom_call.1} parent=1 // pred_check
      _
    $region3: #{tpu_custom_call.1} parent=1 // pred_check_branch
      %14 = sbr.rel (0) target = $region5
    $region4: #{tpu_custom_call.1} parent=1 // pred_region
      _
    $region5: #{tpu_custom_call.1} parent=1 // pred_fallthru
      _
    // Predicated region
    $region6: #{tpu_custom_call.1} parent=1 // pred_check
      _
    $region7: #{tpu_custom_call.1} parent=1 // pred_check_branch
      %16 = sbr.rel (0) target = $region9
    $region8: #{tpu_custom_call.1} parent=1 // pred_region
      %s18 = ssub.s32 2048, 2048
      %19 = vsyncadd [#allocation6], %s18
      %s20 = sshll.u32 [#allocation5], 4
      %s21 = int_to_ptr.vmem [resolvable:$true] %s20
      %26 = dma.hbm_to_vmem [thread:$0]  %s1, 2048, %s21, [#allocation6], 128, 128, 8
    $region9: #{tpu_custom_call.1} parent=1 // pred_fallthru
      _
    // Predicated region
    $region10: #{tpu_custom_call.1} parent=1 // pred_check
      _
    $region11: #{tpu_custom_call.1} parent=1 // pred_check_branch
      %28 = sbr.rel (0) target = $region13
    $region12: #{tpu_custom_call.1} parent=1 // pred_region
      _
    $region13: #{tpu_custom_call.1} parent=1 // pred_fallthru
      _
    // Predicated region
    $region14: #{tpu_custom_call.1} parent=1 // pred_check
      _
    $region15: #{tpu_custom_call.1} parent=1 // pred_check_branch
      %30 = sbr.rel (0) target = $region17
    $region16: #{tpu_custom_call.1} parent=1 // pred_region
      _
    $region17: #{tpu_custom_call.1} parent=1 // pred_fallthru
      _
    // Predicated region
    $region18: #{tpu_custom_call.1} parent=1 // pred_check
      _
    $region19: #{tpu_custom_call.1} parent=1 // pred_check_branch
      %32 = sbr.rel (0) target = $region21
    $region20: #{tpu_custom_call.1} parent=1 // pred_region
      _
    $region21: #{tpu_custom_call.1} parent=1 // pred_fallthru
      _
    // Predicated region
    $region22: #{tpu_custom_call.1} parent=1 // pred_check
      _
    $region23: #{tpu_custom_call.1} parent=1 // pred_check_branch
      %34 = sbr.rel (0) target = $region25
    $region24: #{tpu_custom_call.1} parent=1 // pred_region
      _
    $region25: #{tpu_custom_call.1} parent=1 // pred_fallthru
      _
    // Predicated region
    $region26: #{tpu_custom_call.1} parent=1 // pred_check
      _
    $region27: #{tpu_custom_call.1} parent=1 // pred_check_branch
      %36 = sbr.rel (0) target = $region29
    $region28: #{tpu_custom_call.1} parent=1 // pred_region
      _
    $region29: #{tpu_custom_call.1} parent=1 // pred_fallthru
      _
    // Predicated region
    $region30: #{tpu_custom_call.1} parent=1 // pred_check
      _
    $region31: #{tpu_custom_call.1} parent=1 // pred_check_branch
      %38 = sbr.rel (0) target = $region33
    $region32: #{tpu_custom_call.1} parent=1 // pred_region
      %39 = dma.done [#allocation6], 2048
    $region33: #{tpu_custom_call.1} parent=1 // pred_fallthru
      _
    %s40 = smul.u32 0, 8
    %s41 = smul.u32 0, 128
    %p42 = scmp.eq.s32.totalorder 0, 0
    // Predicated region
    $region34: #{tpu_custom_call.1} parent=1 // pred_check
      %p43 = pneg %p42
    $region35: #{tpu_custom_call.1} parent=1 // pred_check_branch
      %45 = sbr.rel (%p43) target = $region37
    $region36: #{tpu_custom_call.1} parent=1 // pred_region
      %vm46 = vcmask 7168
      %47 = vst.msk [vmem:[#allocation2] sm:$0xff] %vm46, -1e+30
      %48 = vst.msk [vmem:[#allocation3] sm:$0xff] %vm46, 0.0
      %49 = vst.msk [vmem:[#allocation4] sm:$0xff] %vm46, 0.0
    $region37: #{tpu_custom_call.1} parent=1 // pred_fallthru
      _
    %v50 = vld [vmem:[%s0] sm:$0xff]
    %v51 = vld [vmem:[#allocation5] sm:$0xff]
    %v52 = vld [vmem:[#allocation5 + $0x8] sm:$0xff]
    %v53 = vld [vmem:[#allocation5 + $0x10] sm:$0xff]
    %v54 = vld [vmem:[#allocation5 + $0x18] sm:$0xff]
    %v55 = vld [vmem:[#allocation5 + $0x20] sm:$0xff]
    %v56 = vld [vmem:[#allocation5 + $0x28] sm:$0xff]
    %v57 = vld [vmem:[#allocation5 + $0x30] sm:$0xff]
    %v58 = vld [vmem:[#allocation5 + $0x38] sm:$0xff]
    %v59 = vld [vmem:[#allocation5 + $0x40] sm:$0xff]
    %v60 = vld [vmem:[#allocation5 + $0x48] sm:$0xff]
    %v61 = vld [vmem:[#allocation5 + $0x50] sm:$0xff]
    %v62 = vld [vmem:[#allocation5 + $0x58] sm:$0xff]
    %v63 = vld [vmem:[#allocation5 + $0x60] sm:$0xff]
    %v64 = vld [vmem:[#allocation5 + $0x68] sm:$0xff]
    %v65 = vld [vmem:[#allocation5 + $0x70] sm:$0xff]
    %v66 = vld [vmem:[#allocation5 + $0x78] sm:$0xff]
    %67 = vmatprep.subr.mxu0 0.0
    %68 = vmatpush1.msra.mxu0 %v51
    %69 = vmatprep.subr.mxu0 0.0
    %70 = vmatpush1.msra.mxu0 %v52
    %71 = vmatprep.subr.mxu0 0.0
    %72 = vmatpush1.msra.mxu0 %v53
    %73 = vmatprep.subr.mxu0 0.0
    %74 = vmatpush1.msra.mxu0 %v54
    %75 = vmatprep.subr.mxu0 0.0
    %76 = vmatpush1.msra.mxu0 %v55
    %77 = vmatprep.subr.mxu0 0.0
    %78 = vmatpush1.msra.mxu0 %v56
    %79 = vmatprep.subr.mxu0 0.0
    %80 = vmatpush1.msra.mxu0 %v57
    %81 = vmatprep.subr.mxu0 0.0
    %82 = vmatpush1.msra.mxu0 %v58
    %83 = vmatprep.subr.mxu0 0.0
    %84 = vmatpush1.msra.mxu0 %v59
    %85 = vmatprep.subr.mxu0 0.0
    %86 = vmatpush1.msra.mxu0 %v60
    %87 = vmatprep.subr.mxu0 0.0
    %88 = vmatpush1.msra.mxu0 %v61
    %89 = vmatprep.subr.mxu0 0.0
    %90 = vmatpush1.msra.mxu0 %v62
    %91 = vmatprep.subr.mxu0 0.0
    %92 = vmatpush1.msra.mxu0 %v63
    %93 = vmatprep.subr.mxu0 0.0
    %94 = vmatpush1.msra.mxu0 %v64
    %95 = vmatprep.subr.mxu0 0.0
    %96 = vmatpush1.msra.mxu0 %v65
    %97 = vmatprep.subr.mxu0 0.0
    %98 = vmatpush1.msra.mxu0 %v66
    %99 = vmatprep.subr.mxu0 0.0
    %100 = vmatpush1.msra.mxu0 0.0
    %101 = vmatprep.subr.mxu0 0.0
    %102 = vmatpush1.msra.mxu0 0.0
    %103 = vmatprep.subr.mxu0 0.0
    %104 = vmatpush1.msra.mxu0 0.0
    %105 = vmatprep.subr.mxu0 0.0
    %106 = vmatpush1.msra.mxu0 0.0
    %107 = vmatprep.subr.mxu0 0.0
    %108 = vmatpush1.msra.mxu0 0.0
    %109 = vmatprep.subr.mxu0 0.0
    %110 = vmatpush1.msra.mxu0 0.0
    %111 = vmatprep.subr.mxu0 0.0
    %112 = vmatpush1.msra.mxu0 0.0
    %113 = vmatprep.subr.mxu0 0.0
    %114 = vmatpush1.msra.mxu0 0.0
    %115 = vmatprep.subr.mxu0 0.0
    %116 = vmatpush1.msra.mxu0 0.0
    %117 = vmatprep.subr.mxu0 0.0
    %118 = vmatpush1.msra.mxu0 0.0
    %119 = vmatprep.subr.mxu0 0.0
    %120 = vmatpush1.msra.mxu0 0.0
    %121 = vmatprep.subr.mxu0 0.0
    %122 = vmatpush1.msra.mxu0 0.0
    %123 = vmatprep.subr.mxu0 0.0
    %124 = vmatpush1.msra.mxu0 0.0
    %125 = vmatprep.subr.mxu0 0.0
    %126 = vmatpush1.msra.mxu0 0.0
    %127 = vmatprep.subr.mxu0 0.0
    %128 = vmatpush1.msra.mxu0 0.0
    %129 = vmatprep.subr.mxu0 0.0
    %130 = vmatpush1.msra.mxu0 0.0
    %131 = vmatprep.mubr.f32.mxu0 0.0
    %132 = vmatmul.mubr.f32.gmra.mrb[0].mxu0 %v50
    %v133 = vpop.f32.mrb[0].mxu0
    %v134 = vadd.f32 0.0, %v133
    %v135 = vpop.f32.mrb[0].mxu0
    %136 = vdwg.mxu0
    %v137 = vmul.f32 %v134, 14.285714
    %v138 = vlaneseq
    %v139 = vand.u32 %v138, 127
    %v140 = vstv %s41
    %v141 = vadd.s32 %v139, %v140
    %v142 = vlaneseq
    %v143 = vshrl.u32 %v142, 7
    %v144 = vstv %s40
    %v145 = vadd.s32 %v143, %v144
    %vm146 = vcmp.lt.s32.totalorder %v141, 13
    %vm147 = vcmp.ne.s32.totalorder %v141, %v145
    %v148 = vsel %vm146, 1, 0
    %vm149 = vcmp.eq.s32.totalorder %v148, 1
    %vm150 = vmand %vm149, %vm147
    %v151 = vld [vmem:[%s2] sm:$0xff]
    %v152 = vld [vmem:[%s4] sm:$0x1]
    %153 = vset.pattern.permute.xlu0 0
    %154 = vperm.xlu0 %153, %v151
    %v155 = vpop.permute.xlu0 %154
    %v156 = vlaneseq
    %v157 = vshrl.u32 %v156, 7
    %v158 = vsub.s32 0, %v157
    %v159 = vrot.slane %v152, %v158
    %vm160 = vcmp.eq.s32.totalorder %v155, %v159
    %vm161 = vmand %vm160, %vm150
    %v162 = vsel %vm150, %v137, -1e+30
    %163 = vmax.xlane.f32.xlu0 %v162
    %v164 = vpop.xlane.xlu0 %163
    %v165 = vld [vmem:[#allocation2] sm:$0xff]
    %v166 = vmax.f32 %v165, %v164
    %v167 = vsub.f32 %v165, %v166
    %v168 = vmul.f32 %v167, 1.442695
    %v169 = vpow.pop %v168
    %v170 = vld [vmem:[%s6] sm:$0x1]
    %v171 = vld [vmem:[%s5] sm:$0x1]
    %v173 = vlaneseq
    %v174 = vshrl.u32 %v173, 7
    %v175 = vsub.s32 0, %v174
    %v176 = vrot.slane %v170, %v175
    %v179 = vlaneseq
    %v180 = vshrl.u32 %v179, 7
    %v181 = vsub.s32 0, %v180
    %v182 = vrot.slane %v171, %v181
    %v184 = vsel %vm161, %v176, %v182
    %186 = vset.pattern.permute.xlu0 0
    %187 = vperm.xlu0 %186, %v166
    %v188 = vpop.permute.xlu0 %187
    %v190 = vsub.f32 %v137, %v188
    %v191 = vmul.f32 %v190, 1.442695
    %v192 = vpow.pop %v191
    %v193 = vmul.f32 %v192, %v184
    %v194 = vsel %vm150, %v193, 0.0
    %v195 = vld [vmem:[#allocation3] sm:$0xff]
    %v196 = vmul.f32 %v169, %v195
    %197 = vadd.xlane.f32.xlu0 %v194
    %v198 = vpop.xlane.xlu0 %197
    %v199 = vadd.f32 %v196, %v198
    %vm200 = vcmask 7168
    %201 = vst.msk [vmem:[#allocation3] sm:$0xff] %vm200, %v199
    %v202 = vld [vmem:[#allocation4] sm:$0xff]
    %v203 = vsel %vm161, %v137, 0.0
    %204 = vadd.xlane.f32.xlu0 %v203
    %v205 = vpop.xlane.xlu0 %204
    %v206 = vadd.f32 %v202, %v205
    %207 = vst.msk [vmem:[#allocation4] sm:$0xff] %vm200, %v206
    %208 = vst.msk [vmem:[#allocation2] sm:$0xff] %vm200, %v166
    // Predicated region
    $region38: #{tpu_custom_call.1} parent=1 // pred_check
      %p209 = pneg %p42
    $region39: #{tpu_custom_call.1} parent=1 // pred_check_branch
      %211 = sbr.rel (%p209) target = $region41
    $region40: #{tpu_custom_call.1} parent=1 // pred_region
      %v212 = vld [vmem:[%s3] sm:$0xff]
      %v213 = vld [vmem:[#allocation2] sm:$0xff]
      %v214 = vld [vmem:[#allocation3] sm:$0xff]
      %v215 = vlog2.pop %v214
      %v216 = vmul.f32 %v215, 0.6931472
      %v217 = vadd.f32 %v213, %v216
      %vm218 = vcmp.gt.f32.partialorder %v212, 0.0
      %v219 = vsel %vm218, %v212, 1.0
      %v220 = vld [vmem:[#allocation4] sm:$0xff]
      %v221 = vmul.f32 %v212, %v217
      %v222 = vsub.f32 %v220, %v221
      %v223 = vrcp.pop %v219
      %v224 = vmul.f32 %v222, %v223
      %v225 = vsub.f32 0.0, %v224
      %v226 = vsel %vm218, %v225, 0.0
      %227 = vst.msk [vmem:[%s7] sm:$0xff] %vm200, %v226
    $region41: #{tpu_custom_call.1} parent=1 // pred_fallthru
      _
    // Predicated region
    $region42: #{tpu_custom_call.1} parent=1 // pred_check
      _
    $region43: #{tpu_custom_call.1} parent=1 // pred_check_branch
      %229 = sbr.rel (0) target = $region45
    $region44: #{tpu_custom_call.1} parent=1 // pred_region
      _
    $region45: #{tpu_custom_call.1} parent=1 // pred_fallthru
      _
    // Predicated region
    $region46: #{tpu_custom_call.1} parent=1 // pred_check
      _
    $region47: #{tpu_custom_call.1} parent=1 // pred_check_branch
      %231 = sbr.rel (0) target = $region49
    $region48: #{tpu_custom_call.1} parent=1 // pred_region
      _
    $region49: #{tpu_custom_call.1} parent=1 // pred_fallthru
      _
    %232 = vsyncpa [#allocation6], 1

</llo_original>
